<compile_context>
chip_gen: v7x
topology: tpu7x:2x2x1
jax: 0.10.0
libtpu: 0.0.40
codegen_flags: <defaults>
</compile_context>

<pallas_src>
import functools
import math

import jax
import jax.numpy as jnp
from jax import lax
from jax.experimental import pallas as pl
from jax.experimental.pallas import tpu as pltpu


# ----------------------------------------------------------------------------
# Tile-size helper: full dim if small, else the largest aligned divisor.
# ----------------------------------------------------------------------------
def _pick_tile(dim, target, align):
    if dim <= target:
        return dim
    t = (target // align) * align
    while t >= align:
        if dim % t == 0:
            return t
        t -= align
    return dim  # fallback: no aligned divisor -> use the full dimension


# ----------------------------------------------------------------------------
# Tiled linear kernel:  y = x @ Wt + b
#   x : (M, Din)   (cast to bf16 for the MXU)
#   Wt : (Din, Dout) bf16 (pre-transposed -> no in-kernel transpose)
#   b  : (1, Dout) f32
# grid = (M/tm, Dout/tn, Din/tk); K is the innermost ("arbitrary") axis.
# ----------------------------------------------------------------------------
def _linear_kernel(x_ref, wt_ref, b_ref, o_ref, acc_ref):
    @pl.when(pl.program_id(2) == 0)
    def _():
        acc_ref[...] = jnp.zeros_like(acc_ref)

    x = x_ref[...].astype(jnp.bfloat16)
    w = wt_ref[...].astype(jnp.bfloat16)
    acc_ref[...] += jnp.dot(x, w, preferred_element_type=jnp.float32)

    @pl.when(pl.program_id(2) == pl.num_programs(2) - 1)
    def _():
        y = acc_ref[...] + b_ref[...].astype(jnp.float32)
        o_ref[...] = y.astype(o_ref.dtype)


def linear_pallas(x, wt, b, out_dtype=jnp.float32):
    """x: (M, Din), wt: (Din, Dout) bf16, b: (Dout,) f32 -> (M, Dout)."""
    M, Din = x.shape
    Din2, Dout = wt.shape
    assert Din == Din2

    tm = _pick_tile(M, 256, 16)
    tk = _pick_tile(Din, 512, 128)
    tn = _pick_tile(Dout, 512, 128)
    grid = (M // tm, Dout // tn, Din // tk)

    b2 = b.reshape(1, Dout).astype(jnp.float32)

    return pl.pallas_call(
        _linear_kernel,
        out_shape=jax.ShapeDtypeStruct((M, Dout), out_dtype),
        grid=grid,
        in_specs=[
            pl.BlockSpec((tm, tk), lambda i, j, k: (i, k)),
            pl.BlockSpec((tk, tn), lambda i, j, k: (k, j)),
            pl.BlockSpec((1, tn), lambda i, j, k: (0, j)),
        ],
        out_specs=pl.BlockSpec((tm, tn), lambda i, j, k: (i, j)),
        scratch_shapes=[pltpu.VMEM((tm, tn), jnp.float32)],
        compiler_params=pltpu.CompilerParams(
            dimension_semantics=("parallel", "parallel", "arbitrary")),
    )(x, wt, b2)


# ----------------------------------------------------------------------------
# Flash-style attention (no mask): per (batch*head, q_tile) the KV axis is a
# reduction carried in VMEM scratch (running max / sum / accumulator).
# ----------------------------------------------------------------------------
def _flash_attn_kernel(q_ref, k_ref, v_ref, o_ref, m_sc, l_sc, acc_sc, *, scale):
    ki = pl.program_id(2)

    @pl.when(ki == 0)
    def _():
        m_sc[...] = jnp.full_like(m_sc, -jnp.inf)
        l_sc[...] = jnp.zeros_like(l_sc)
        acc_sc[...] = jnp.zeros_like(acc_sc)

    q = q_ref[...].astype(jnp.bfloat16)            # (tq, hd)
    k = k_ref[...].astype(jnp.bfloat16)            # (tk, hd)
    v = v_ref[...].astype(jnp.bfloat16)            # (tk, hd)

    # (tq, hd) x (tk, hd) contracted on hd -> (tq, tk); no in-kernel transpose.
    s = lax.dot_general(q, k, (((1,), (1,)), ((), ())),
                        preferred_element_type=jnp.float32) * scale

    m_prev = m_sc[...]                             # (tq, 1)
    m_new = jnp.maximum(m_prev, jnp.max(s, axis=-1, keepdims=True))
    alpha = jnp.exp(m_prev - m_new)                # (tq, 1) f32
    p = jnp.exp(s - m_new)                         # (tq, tk) f32

    l_sc[...] = alpha * l_sc[...] + jnp.sum(p, axis=-1, keepdims=True)
    acc_sc[...] = alpha * acc_sc[...] + jnp.dot(
        p.astype(jnp.bfloat16), v, preferred_element_type=jnp.float32)
    m_sc[...] = m_new

    @pl.when(ki == pl.num_programs(2) - 1)
    def _():
        inv_l = pl.reciprocal(l_sc[...], approx=True)
        o_ref[...] = (acc_sc[...] * inv_l).astype(o_ref.dtype)


def flash_attention(Q, K, V, head_dim):
    """Q: (BH, Tq, hd), K/V: (BH, Tk, hd) -> softmax(QK^T/sqrt(hd)) V."""
    BH, Tq, hd = Q.shape
    _, Tk, _ = K.shape
    scale = 1.0 / math.sqrt(head_dim)

    tq = _pick_tile(Tq, 256, 16)
    tk = _pick_tile(Tk, 256, 16)
    grid = (BH, Tq // tq, Tk // tk)

    q_spec = pl.BlockSpec((None, tq, hd), lambda bh, qi, ki: (bh, qi, 0))
    kv_spec = pl.BlockSpec((None, tk, hd), lambda bh, qi, ki: (bh, ki, 0))
    o_spec = pl.BlockSpec((None, tq, hd), lambda bh, qi, ki: (bh, qi, 0))

    return pl.pallas_call(
        functools.partial(_flash_attn_kernel, scale=scale),
        out_shape=jax.ShapeDtypeStruct((BH, Tq, hd), Q.dtype),
        grid=grid,
        in_specs=[q_spec, kv_spec, kv_spec],
        out_specs=o_spec,
        scratch_shapes=[
            pltpu.VMEM((tq, 1), jnp.float32),   # running max
            pltpu.VMEM((tq, 1), jnp.float32),   # running sum
            pltpu.VMEM((tq, hd), jnp.float32),  # output accumulator
        ],
        compiler_params=pltpu.CompilerParams(
            dimension_semantics=("parallel", "parallel", "arbitrary")),
    )(Q, K, V)


# ----------------------------------------------------------------------------
# Parameter preparation: (Dout, Din) -> (Din, Dout) transpose + bf16 cast ONCE,
# plus the fused QKV weight for the self-attention path.
# ----------------------------------------------------------------------------
def prepare_params(params):
    def prep(w):
        return jnp.asarray(w).T.astype(jnp.bfloat16)

    wqkv = jnp.concatenate([params["wq"], params["wk"], params["wv"]], axis=0)
    bqkv = jnp.concatenate([params["bq"], params["bk"], params["bv"]], axis=0)
    return {
        "wq_t": prep(params["wq"]), "bq": params["bq"],
        "wk_t": prep(params["wk"]), "bk": params["bk"],
        "wv_t": prep(params["wv"]), "bv": params["bv"],
        "wqkv_t": prep(wqkv), "bqkv": bqkv,
        "wo_t": prep(params["wo"]), "bo": params["bo"],
    }


# ----------------------------------------------------------------------------
# Full MultiHeadAttention forward (mask=None path, matching the PyTorch module)
# ----------------------------------------------------------------------------
def multi_head_attention(query, key, value, prepared, num_heads, mask=None):
    # TODO(synk): optional `mask` argument not implemented (None path only).
    assert mask is None
    B, Tq, D = query.shape
    _, Tk, _ = key.shape
    H = num_heads
    assert D % H == 0, "embed_dim must be divisible by num_heads"
    hd = D // H

    if query is key and key is value:
        # Self-attention: fused QKV projection -> one pass over the activation.
        qkv = linear_pallas(query.reshape(B * Tq, D), prepared["wqkv_t"],
                            prepared["bqkv"], out_dtype=jnp.bfloat16)
        q, k, v = qkv[:, :D], qkv[:, D:2 * D], qkv[:, 2 * D:]
        Tk = Tq
    else:
        q = linear_pallas(query.reshape(B * Tq, D), prepared["wq_t"],
                          prepared["bq"], out_dtype=jnp.bfloat16)
        k = linear_pallas(key.reshape(B * Tk, D), prepared["wk_t"],
                          prepared["bk"], out_dtype=jnp.bfloat16)
        v = linear_pallas(value.reshape(B * Tk, D), prepared["wv_t"],
                          prepared["bv"], out_dtype=jnp.bfloat16)

    # (B*T, D) -> (B*H, T, hd).
    # TODO(synk): fold the head split/merge into the attention BlockSpec
    # (strided DMA over the head axis) to drop these XLA transposes entirely.
    def split_heads(x, T):
        return x.reshape(B, T, H, hd).transpose(0, 2, 1, 3).reshape(B * H, T, hd)

    attn = flash_attention(split_heads(q, Tq), split_heads(k, Tk),
                           split_heads(v, Tk), hd)
    attn = attn.reshape(B, H, Tq, hd).transpose(0, 2, 1, 3).reshape(B * Tq, D)

    out = linear_pallas(attn, prepared["wo_t"], prepared["bo"],
                        out_dtype=jnp.float32)
    return out.reshape(B, Tq, D)


# Pure-JAX f32 reference for correctness checking.
def multi_head_attention_ref(query, key, value, params, num_heads):
    B, T, D = query.shape
    H = num_heads
    hd = D // H

    def lin(x, w, b):
        return x @ w.T + b

    def split_heads(x):
        return x.reshape(B, -1, H, hd).transpose(0, 2, 1, 3)

    Q = split_heads(lin(query, params["wq"], params["bq"]))
    K = split_heads(lin(key, params["wk"], params["bk"]))
    V = split_heads(lin(value, params["wv"], params["bv"]))
    s = jnp.einsum("bhqd,bhkd->bhqk", Q, K) / math.sqrt(hd)
    p = jax.nn.softmax(s, axis=-1)
    o = jnp.einsum("bhqk,bhkd->bhqd", p, V)
    o = o.transpose(0, 2, 1, 3).reshape(B, T, D)
    return lin(o, params["wo"], params["bo"])


if __name__ == "__main__":
    B, T, D, H = 2, 8, 32, 4

    key0 = jax.random.PRNGKey(0)
    keys = jax.random.split(key0, 12)

    def init_linear(kw, kb, fan_in, fan_out):
        bound = 1.0 / math.sqrt(fan_in)
        w = jax.random.uniform(kw, (fan_out, fan_in), jnp.float32, -bound, bound)
        b = jax.random.uniform(kb, (fan_out,), jnp.float32, -bound, bound)
        return w, b

    wq, bq = init_linear(keys[0], keys[1], D, D)
    wk, bk = init_linear(keys[2], keys[3], D, D)
    wv, bv = init_linear(keys[4], keys[5], D, D)
    wo, bo = init_linear(keys[6], keys[7], D, D)
    params = dict(wq=wq, bq=bq, wk=wk, bk=bk, wv=wv, bv=bv, wo=wo, bo=bo)
    prepared = prepare_params(params)

    query = jax.random.normal(keys[8], (B, T, D), jnp.float32)
    key_in = jax.random.normal(keys[9], (B, T, D), jnp.float32)
    value = jax.random.normal(keys[10], (B, T, D), jnp.float32)

    # Cross-attention path (three separate tiled projections).
    out = multi_head_attention(query, key_in, value, prepared, H)
    out = jax.block_until_ready(out)
    ref = multi_head_attention_ref(query, key_in, value, params, H)
    assert out.shape == (B, T, D)
    assert jnp.allclose(out, ref, atol=5e-2, rtol=5e-2), "cross-attn mismatch"

    # Self-attention path (fused QKV projection).
    out_sa = multi_head_attention(query, query, query, prepared, H)
    out_sa = jax.block_until_ready(out_sa)
    ref_sa = multi_head_attention_ref(query, query, query, params, H)
    assert jnp.allclose(out_sa, ref_sa, atol=5e-2, rtol=5e-2), "self-attn mismatch"

    print("KERNEL_OK")
</pallas_src>

<mosaic_0001>
module attributes {stable_mosaic.version = 11 : i64} {
  func.func @_linear_kernel(%arg0: i32, %arg1: i32, %arg2: i32, %arg3: memref<16x32xf32, #tpu.memory_space<vmem>>, %arg4: memref<32x32xbf16, #tpu.memory_space<vmem>>, %arg5: memref<1x32xf32, #tpu.memory_space<vmem>>, %arg6: memref<16x32xbf16, #tpu.memory_space<vmem>>, %arg7: memref<16x32xf32, #tpu.memory_space<vmem>>) attributes {dimension_semantics = [#tpu.dimension_semantics<parallel>, #tpu.dimension_semantics<parallel>, #tpu.dimension_semantics<arbitrary>], iteration_bounds = array<i64: 1, 1, 1>, scalar_prefetch = 0 : i64, scratch_operands = 1 : i64, tpu.core_type = #tpu.core_type<tc>, window_params = [{transform_indices = @transform_0, window_bounds = array<i64: 16, 32>}, {transform_indices = @transform_1, window_bounds = array<i64: 32, 32>}, {transform_indices = @transform_2, window_bounds = array<i64: 1, 32>}, {transform_indices = @transform_3, window_bounds = array<i64: 16, 32>}]} {
    %c0_i32 = arith.constant 0 : i32
    %0 = arith.cmpi eq, %arg2, %c0_i32 : i32
    %1 = arith.extui %0 : i1 to i32
    %c0_i32_0 = arith.constant 0 : i32
    %2 = arith.cmpi ne, %1, %c0_i32_0 : i32
    scf.if %2 {
      %cst_10 = arith.constant 0.000000e+00 : f32
      %13 = vector.broadcast %cst_10 : f32 to vector<16x32xf32>
      %c0_11 = arith.constant 0 : index
      %c0_12 = arith.constant 0 : index
      %14 = vector.load %arg7[%c0_11, %c0_12] : memref<16x32xf32, #tpu.memory_space<vmem>>, vector<16x32xf32>
      tpu.vector_store %arg7[%c0_11, %c0_12], %13 {strides = array<i32>} : memref<16x32xf32, #tpu.memory_space<vmem>>, vector<16x32xf32>,
    } else {
    }
    %c0 = arith.constant 0 : index
    %c0_1 = arith.constant 0 : index
    %3 = vector.load %arg3[%c0, %c0_1] : memref<16x32xf32, #tpu.memory_space<vmem>>, vector<16x32xf32>
    %4 = arith.truncf %3 : vector<16x32xf32> to vector<16x32xbf16>
    %c0_2 = arith.constant 0 : index
    %c0_3 = arith.constant 0 : index
    %5 = vector.load %arg4[%c0_2, %c0_3] : memref<32x32xbf16, #tpu.memory_space<vmem>>, vector<32x32xbf16>
    %c0_4 = arith.constant 0 : index
    %c0_5 = arith.constant 0 : index
    %6 = vector.load %arg7[%c0_4, %c0_5] : memref<16x32xf32, #tpu.memory_space<vmem>>, vector<16x32xf32>
    %cst = arith.constant dense<0.000000e+00> : vector<16x32xf32>
    %7 = tpu.matmul %4, %5, %cst {dimension_numbers = #tpu.dot_dimension_numbers<[1], [0], [0], [1], [0, 0, 1, 1], [], []>} : vector<16x32xbf16>, vector<32x32xbf16>, vector<16x32xf32> -> vector<16x32xf32>
    %8 = arith.addf %6, %7 : vector<16x32xf32>
    %c0_6 = arith.constant 0 : index
    %c0_7 = arith.constant 0 : index
    %9 = vector.load %arg7[%c0_6, %c0_7] : memref<16x32xf32, #tpu.memory_space<vmem>>, vector<16x32xf32>
    tpu.vector_store %arg7[%c0_6, %c0_7], %8 {strides = array<i32>} : memref<16x32xf32, #tpu.memory_space<vmem>>, vector<16x32xf32>,
    %c0_i32_8 = arith.constant 0 : i32
    %10 = arith.cmpi eq, %arg2, %c0_i32_8 : i32
    %11 = arith.extui %10 : i1 to i32
    %c0_i32_9 = arith.constant 0 : i32
    %12 = arith.cmpi ne, %11, %c0_i32_9 : i32
    scf.if %12 {
      %c0_10 = arith.constant 0 : index
      %c0_11 = arith.constant 0 : index
      %13 = vector.load %arg7[%c0_10, %c0_11] : memref<16x32xf32, #tpu.memory_space<vmem>>, vector<16x32xf32>
      %c0_12 = arith.constant 0 : index
      %c0_13 = arith.constant 0 : index
      %14 = vector.load %arg5[%c0_12, %c0_13] : memref<1x32xf32, #tpu.memory_space<vmem>>, vector<1x32xf32>
      %15 = vector.broadcast %14 : vector<1x32xf32> to vector<16x32xf32>
      %16 = arith.addf %13, %15 : vector<16x32xf32>
      %17 = arith.truncf %16 : vector<16x32xf32> to vector<16x32xbf16>
      %c0_14 = arith.constant 0 : index
      %c0_15 = arith.constant 0 : index
      %18 = vector.load %arg6[%c0_14, %c0_15] : memref<16x32xbf16, #tpu.memory_space<vmem>>, vector<16x32xbf16>
      tpu.vector_store %arg6[%c0_14, %c0_15], %17 {strides = array<i32>} : memref<16x32xbf16, #tpu.memory_space<vmem>>, vector<16x32xbf16>,
    } else {
    }
    return
  }
  func.func @transform_0(%arg0: i32, %arg1: i32, %arg2: i32) -> (i32, i32) {
    %c0_i32 = arith.constant 0 : i32
    return %arg0, %arg2 : i32, i32
  }
  func.func @transform_1(%arg0: i32, %arg1: i32, %arg2: i32) -> (i32, i32) {
    %c0_i32 = arith.constant 0 : i32
    return %arg2, %arg1 : i32, i32
  }
  func.func @transform_2(%arg0: i32, %arg1: i32, %arg2: i32) -> (i32, i32) {
    %c0_i32 = arith.constant 0 : i32
    %c0_i32_0 = arith.constant 0 : i32
    return %c0_i32, %arg1 : i32, i32
  }
  func.func @transform_3(%arg0: i32, %arg1: i32, %arg2: i32) -> (i32, i32) {
    %c0_i32 = arith.constant 0 : i32
    return %arg0, %arg1 : i32, i32
  }
}

</mosaic_0001>

<llo_original>
// kernel: tpu_custom_call.1
$region0: #{tpu_custom_call.1}
  #allocation0 [shape = 'u32[]', space=smem, size = 0x4, offset = 0x4, fixed_abs, tag = 'smem constant byte address 0x4 - core index']
  #allocation1 [shape = 'u32[144,128]{1,0:T(1,128)}', space=vmem, size = 0x12000, scoped, tag = 'internal scratch']
  #allocation2 [shape = 'f32[16,32]{1,0:T(8,128)}', space=vmem, size = 0x2000, scoped, tag = 'scratch operand']
  %s0 = inlined_call_operand.hbm [shape: f32[16,32], index: 0, kind: input, shape index: {}]
  %s1 = inlined_call_operand.hbm [shape: bf16[32,32], index: 1, kind: input, shape index: {}]
  %s2 = inlined_call_operand.vmem [shape: f32[1,32], index: 2, kind: input, shape index: {}]
  %s3 = inlined_call_operand.hbm [shape: bf16[16,32], index: 3, kind: output, shape index: {}]
  %s4 = sld [smem:[#allocation0]]
  $region38: #{tpu_custom_call.1} parent=0
    _
  %s6 = ssub.s32 1, %s4
  %s7 = scalar_select 0, %s6, %s4
  $region1: #{tpu_custom_call.1} parent=0
    #allocation3 [shape = 'u8[8192]{0}', space=vmem, size = 0x2000, scoped, tag = 'input window, operand 0, single buffered']
    #allocation4 [shape = 's32[1]{0}', space=sflag, size = 0x4, scoped, tag = 'scoped memory for tpu_custom_call.1']
    #allocation5 [shape = 's32[1]{0}', space=sflag, size = 0x4, scoped, tag = 'scoped memory for tpu_custom_call.1']
    #allocation6 [shape = 'u8[8192]{0}', space=vmem, size = 0x2000, scoped, tag = 'input window, operand 1, single buffered']
    #allocation7 [shape = 's32[1]{0}', space=sflag, size = 0x4, scoped, tag = 'scoped memory for tpu_custom_call.1']
    #allocation8 [shape = 'u8[4096]{0}', space=vmem, size = 0x1000, scoped, tag = 'output window, operand 0, single buffered']
    %8 = vsyncpa [#allocation4], 0
    %9 = vsyncpa [#allocation7], 0
    %10 = vsyncpa [#allocation5], 0
    // Predicated region
    $region2: #{tpu_custom_call.1} parent=1 // pred_check
      _
    $region3: #{tpu_custom_call.1} parent=1 // pred_check_branch
      %12 = sbr.rel (0) target = $region5
    $region4: #{tpu_custom_call.1} parent=1 // pred_region
      %s14 = ssub.s32 256, 256
      %15 = vsyncadd [#allocation4], %s14
      %s16 = sshll.u32 [#allocation3], 4
      %s17 = int_to_ptr.vmem [resolvable:$true] %s16
      %22 = dma.hbm_to_vmem [thread:$0]  %s0, 256, %s17, [#allocation4], 128, 128, 8
    $region5: #{tpu_custom_call.1} parent=1 // pred_fallthru
      _
    // Predicated region
    $region6: #{tpu_custom_call.1} parent=1 // pred_check
      _
    $region7: #{tpu_custom_call.1} parent=1 // pred_check_branch
      %24 = sbr.rel (0) target = $region9
    $region8: #{tpu_custom_call.1} parent=1 // pred_region
      %s26 = ssub.s32 256, 256
      %27 = vsyncadd [#allocation7], %s26
      %s28 = sshll.u32 [#allocation6], 4
      %s29 = int_to_ptr.vmem [resolvable:$true] %s28
      %34 = dma.hbm_to_vmem [thread:$0]  %s1, 256, %s29, [#allocation7], 64, 64, 4
    $region9: #{tpu_custom_call.1} parent=1 // pred_fallthru
      _
    // Predicated region
    $region10: #{tpu_custom_call.1} parent=1 // pred_check
      _
    $region11: #{tpu_custom_call.1} parent=1 // pred_check_branch
      %36 = sbr.rel (0) target = $region13
    $region12: #{tpu_custom_call.1} parent=1 // pred_region
      _
    $region13: #{tpu_custom_call.1} parent=1 // pred_fallthru
      _
    // Predicated region
    $region14: #{tpu_custom_call.1} parent=1 // pred_check
      _
    $region15: #{tpu_custom_call.1} parent=1 // pred_check_branch
      %38 = sbr.rel (0) target = $region17
    $region16: #{tpu_custom_call.1} parent=1 // pred_region
      %39 = dma.done [#allocation4], 256
    $region17: #{tpu_custom_call.1} parent=1 // pred_fallthru
      _
    // Predicated region
    $region18: #{tpu_custom_call.1} parent=1 // pred_check
      _
    $region19: #{tpu_custom_call.1} parent=1 // pred_check_branch
      %41 = sbr.rel (0) target = $region21
    $region20: #{tpu_custom_call.1} parent=1 // pred_region
      %42 = dma.done [#allocation7], 256
    $region21: #{tpu_custom_call.1} parent=1 // pred_fallthru
      _
    %p44 = scmp.eq.s32.totalorder 0, 0
    // Predicated region
    $region22: #{tpu_custom_call.1} parent=1 // pred_check
      %p45 = pneg %p44
    $region23: #{tpu_custom_call.1} parent=1 // pred_check_branch
      %47 = sbr.rel (%p45) target = $region25
    $region24: #{tpu_custom_call.1} parent=1 // pred_region
      %vm48 = vcmask 261120
      %49 = vst.msk [vmem:[#allocation2] sm:$0xff] %vm48, 0.0
      %50 = vst.msk [vmem:[#allocation2 + $0x8] sm:$0xff] %vm48, 0.0
    $region25: #{tpu_custom_call.1} parent=1 // pred_fallthru
      _
    %v51 = vld [vmem:[#allocation3] sm:$0xff]
    %v52 = vld [vmem:[#allocation3 + $0x8] sm:$0xff]
    %v53 = vpack.c.bf16 %v52, %v51
    %v54 = vld [vmem:[#allocation6] sm:$0xf]
    %v55 = vld [vmem:[#allocation6 + $0x4] sm:$0xf]
    %v56 = vld [vmem:[#allocation6 + $0x8] sm:$0xf]
    %v57 = vld [vmem:[#allocation6 + $0xc] sm:$0xf]
    %v58 = vld [vmem:[#allocation2] sm:$0xff]
    %v59 = vld [vmem:[#allocation2 + $0x8] sm:$0xff]
    %v64 = vunpack.c.l.b16 %v54
    %v65 = vunpack.c.l.b16 %v55
    %v66 = vunpack.c.l.b16 %v56
    %v67 = vunpack.c.l.b16 %v57
    %v68 = vpack.c.b16 %v65, %v64
    %v69 = vpack.c.b16 %v67, %v66
    %vm72 = vcmask 261120
    %v74 = vsel %vm72, %v53, 0
    %76 = vmatprep.subr.bf16.mxu0 0
    %77 = vmatpush1.bf16.msra.mxu0 %v68
    %78 = vmatprep.subr.bf16.mxu0 0
    %79 = vmatpush1.bf16.msra.mxu0 %v69
    %80 = vmatprep.subr.bf16.mxu0 0
    %81 = vmatpush1.bf16.msra.mxu0 0
    %82 = vmatprep.subr.bf16.mxu0 0
    %83 = vmatpush1.bf16.msra.mxu0 0
    %84 = vmatprep.subr.bf16.mxu0 0
    %85 = vmatpush1.bf16.msra.mxu0 0
    %86 = vmatprep.subr.bf16.mxu0 0
    %87 = vmatpush1.bf16.msra.mxu0 0
    %88 = vmatprep.subr.bf16.mxu0 0
    %89 = vmatpush1.bf16.msra.mxu0 0
    %90 = vmatprep.subr.bf16.mxu0 0
    %91 = vmatpush1.bf16.msra.mxu0 0
    %92 = vmatprep.subr.bf16.mxu0 0
    %93 = vmatpush1.bf16.msra.mxu0 0
    %94 = vmatprep.subr.bf16.mxu0 0
    %95 = vmatpush1.bf16.msra.mxu0 0
    %96 = vmatprep.subr.bf16.mxu0 0
    %97 = vmatpush1.bf16.msra.mxu0 0
    %98 = vmatprep.subr.bf16.mxu0 0
    %99 = vmatpush1.bf16.msra.mxu0 0
    %100 = vmatprep.subr.bf16.mxu0 0
    %101 = vmatpush1.bf16.msra.mxu0 0
    %102 = vmatprep.subr.bf16.mxu0 0
    %103 = vmatpush1.bf16.msra.mxu0 0
    %104 = vmatprep.subr.bf16.mxu0 0
    %105 = vmatpush1.bf16.msra.mxu0 0
    %106 = vmatprep.subr.bf16.mxu0 0
    %107 = vmatpush1.bf16.msra.mxu0 0
    %108 = vmatprep.mubr.bf16.mxu0 0
    %109 = vmatmul.mubr.bf16.gmra.mrb[0].mxu0 %v74
    %v110 = vpop.f32.mrb[0].mxu0
    %v111 = vadd.f32 0.0, %v110
    %v112 = vpop.f32.mrb[0].mxu0
    %v113 = vpop.f32.mrb[0].mxu0
    %v114 = vadd.f32 0.0, %v113
    %v115 = vpop.f32.mrb[0].mxu0
    %116 = vdwg.mxu0
    %v117 = vadd.f32 %v58, %v111
    %v118 = vadd.f32 %v59, %v114
    %119 = vst.msk [vmem:[#allocation2] sm:$0xff] %vm72, %v117
    %120 = vst.msk [vmem:[#allocation2 + $0x8] sm:$0xff] %vm72, %v118
    // Predicated region
    $region26: #{tpu_custom_call.1} parent=1 // pred_check
      %p121 = pneg %p44
    $region27: #{tpu_custom_call.1} parent=1 // pred_check_branch
      %123 = sbr.rel (%p121) target = $region29
    $region28: #{tpu_custom_call.1} parent=1 // pred_region
      %v124 = vld [vmem:[#allocation2] sm:$0xff]
      %v125 = vld [vmem:[#allocation2 + $0x8] sm:$0xff]
      %v126 = vld [vmem:[%s2] sm:$0x1]
      %v128 = vlaneseq
      %v129 = vshrl.u32 %v128, 7
      %v130 = vsub.s32 0, %v129
      %v131 = vrot.slane %v126, %v130
      %v133 = vadd.f32 %v124, %v131
      %v134 = vadd.f32 %v125, %v131
      %v135 = vpack.c.bf16 %v134, %v133
      %v137 = vunpack.c.l.b16 %v135
      %v138 = vunpack.c.h.b16 %v135
      %v139 = vpack.c.b16 %v137, %v137
      %v140 = vpack.c.b16 %v138, %v138
      %vm143 = vcmask 257024
      %144 = vst.msk [vmem:[#allocation8] sm:$0xf] %vm143, %v139
      %145 = vst.msk [vmem:[#allocation8 + $0x4] sm:$0xf] %vm143, %v140
    $region29: #{tpu_custom_call.1} parent=1 // pred_fallthru
      _
    // Predicated region
    $region30: #{tpu_custom_call.1} parent=1 // pred_check
      _
    $region31: #{tpu_custom_call.1} parent=1 // pred_check_branch
      %147 = sbr.rel (0) target = $region33
    $region32: #{tpu_custom_call.1} parent=1 // pred_region
      %s149 = ssub.s32 128, 128
      %150 = vsyncadd [#allocation5], %s149
      %s151 = sshll.u32 [#allocation8], 4
      %s152 = int_to_ptr.vmem [resolvable:$true] %s151
      %157 = dma.vmem_to_hbm [thread:$0]  %s152, 128, %s3, [#allocation5], 64, 64, 4
    $region33: #{tpu_custom_call.1} parent=1 // pred_fallthru
      _
    // Predicated region
    $region34: #{tpu_custom_call.1} parent=1 // pred_check
      _
    $region35: #{tpu_custom_call.1} parent=1 // pred_check_branch
      %159 = sbr.rel (0) target = $region37
    $region36: #{tpu_custom_call.1} parent=1 // pred_region
      %160 = dma.done [#allocation5], 128
    $region37: #{tpu_custom_call.1} parent=1 // pred_fallthru
      _
    %161 = vsyncpa [#allocation4], 1
    %162 = vsyncpa [#allocation7], 1
    %163 = vsyncpa [#allocation5], 1

</llo_original>
